<compile_context>
chip_gen: v7x
topology: tpu7x:2x2x1
jax: 0.10.0
libtpu: 0.0.40
codegen_flags: <defaults>
</compile_context>

<pallas_src>
import functools

import jax
import jax.numpy as jnp
from jax import lax
from jax.experimental import pallas as pl
from jax.experimental.pallas import tpu as pltpu


# ----------------------------- shared in-kernel helpers -----------------------------
def _channel_attn(means, w_ref, pad_ref, c, k, pad):
    """sigmoid(k-tap zero-padded conv across channels), vectorized over C.

    means:   (C, 1) f32 per-channel means (channels on sublanes).
    w_ref:   (k,)   f32 SMEM -- middle row of the Conv2d(1, 1, k) weight.
    pad_ref: (C + 2*pad, 1) f32 VMEM scratch holding the zero-padded means.
    """
    pad_ref[...] = jnp.zeros_like(pad_ref)
    pad_ref[pl.ds(pad, c), :] = means
    v = w_ref[0] * pad_ref[pl.ds(0, c), :]
    for kk in range(1, k):                        # k is tiny (3 for ECA): k vector FMAs
        v = v + w_ref[kk] * pad_ref[pl.ds(kk, c), :]
    return 1.0 / (1.0 + jnp.exp(-v))              # (C, 1) f32; exp lands on the EUP slot


# --------------------------------- fused single pass ---------------------------------
def _eca_fused_kernel(x_ref, w_ref, o_ref, pad_ref, *, k, pad):
    # x_ref / o_ref: (BT, C, HWT) blocks -- one grid step handles BT batch elements.
    bt, c, hwt = x_ref.shape
    inv_n = 1.0 / float(hwt)
    for bi in range(bt):                                    # BT <= 8 by policy
        xf = x_ref[bi].astype(jnp.float32)                  # (C, HWT)
        sums = jnp.sum(xf, axis=1, keepdims=True)           # single whole-block lane reduce
        attn = _channel_attn(sums * inv_n, w_ref, pad_ref, c, k, pad)   # (C, 1)
        o_ref[bi] = (xf * attn).astype(o_ref.dtype)         # one long, unmasked store stream


def _fused_call(x2, w_mid, *, bt, k, pad, phys):
    b, c, hwt = x2.shape
    itemsize = jnp.dtype(x2.dtype).itemsize
    block_bytes = bt * c * hwt * itemsize
    kern = functools.partial(_eca_fused_kernel, k=k, pad=pad)
    return pl.pallas_call(
        kern,
        out_shape=jax.ShapeDtypeStruct((b, c, hwt), x2.dtype),
        grid=(b // bt,),
        in_specs=[
            pl.BlockSpec((bt, c, hwt), lambda i: (i, 0, 0)),
            pl.BlockSpec(memory_space=pltpu.MemorySpace.SMEM),
        ],
        out_specs=pl.BlockSpec((bt, c, hwt), lambda i: (i, 0, 0)),
        scratch_shapes=[pltpu.VMEM((c + 2 * pad, 1), jnp.float32)],
        compiler_params=pltpu.CompilerParams(
            dimension_semantics=("parallel",),
            vmem_limit_bytes=_vmem_limit(block_bytes, phys),
        ),
        cost_estimate=pl.CostEstimate(
            flops=2 * b * c * hwt,
            transcendentals=b * c,
            bytes_accessed=2 * b * c * hwt * itemsize,
        ),
    )(x2, w_mid)


# ------------------------- tiled two-kernel path (large slabs) -------------------------
def _eca_pool_attn_kernel(x_ref, w_ref, attn_ref, acc_ref, pad_ref, *, k, pad, inv_n):
    # x_ref: (1, C, TS) spatial tile; attn_ref: (1, C, 1); acc_ref: (C, 1) f32 accumulator.
    c = x_ref.shape[1]
    s = pl.program_id(1)

    @pl.when(s == 0)
    def _():
        acc_ref[...] = jnp.zeros_like(acc_ref)

    acc_ref[...] += jnp.sum(x_ref[0].astype(jnp.float32), axis=1, keepdims=True)

    @pl.when(s == pl.num_programs(1) - 1)
    def _():
        attn_ref[0] = _channel_attn(acc_ref[...] * inv_n, w_ref, pad_ref, c, k, pad)


def _eca_scale_kernel(x_ref, attn_ref, o_ref):
    # x_ref / o_ref: (1, C, TS); attn_ref: (1, C, 1) broadcasts along lanes.
    o_ref[0] = (x_ref[0].astype(jnp.float32) * attn_ref[0]).astype(o_ref.dtype)


def _pool_attn_call(x2, w_mid, *, ts, k, pad, phys):
    b, c, hwt = x2.shape
    itemsize = jnp.dtype(x2.dtype).itemsize
    n_s = hwt // ts
    kern = functools.partial(_eca_pool_attn_kernel, k=k, pad=pad, inv_n=1.0 / float(hwt))
    return pl.pallas_call(
        kern,
        out_shape=jax.ShapeDtypeStruct((b, c, 1), jnp.float32),
        grid=(b, n_s),                                     # reduction axis last
        in_specs=[
            pl.BlockSpec((1, c, ts), lambda bi, si: (bi, 0, si)),
            pl.BlockSpec(memory_space=pltpu.MemorySpace.SMEM),
        ],
        out_specs=pl.BlockSpec((1, c, 1), lambda bi, si: (bi, 0, 0)),
        scratch_shapes=[
            pltpu.VMEM((c, 1), jnp.float32),
            pltpu.VMEM((c + 2 * pad, 1), jnp.float32),
        ],
        compiler_params=pltpu.CompilerParams(
            dimension_semantics=("parallel", "arbitrary"),
            vmem_limit_bytes=_vmem_limit(c * ts * itemsize, phys),
        ),
        cost_estimate=pl.CostEstimate(
            flops=b * c * hwt,
            transcendentals=b * c,
            bytes_accessed=b * c * hwt * itemsize + b * c * 4,
        ),
    )(x2, w_mid)


def _scale_call(x2, attn, *, ts, phys):
    b, c, hwt = x2.shape
    itemsize = jnp.dtype(x2.dtype).itemsize
    n_s = hwt // ts
    return pl.pallas_call(
        _eca_scale_kernel,
        out_shape=jax.ShapeDtypeStruct((b, c, hwt), x2.dtype),
        grid=(b, n_s),
        in_specs=[
            pl.BlockSpec((1, c, ts), lambda bi, si: (bi, 0, si)),
            pl.BlockSpec((1, c, 1), lambda bi, si: (bi, 0, 0)),
        ],
        out_specs=pl.BlockSpec((1, c, ts), lambda bi, si: (bi, 0, si)),
        compiler_params=pltpu.CompilerParams(
            dimension_semantics=("parallel", "parallel"),
            vmem_limit_bytes=_vmem_limit(c * ts * itemsize, phys),
        ),
        cost_estimate=pl.CostEstimate(
            flops=b * c * hwt,
            transcendentals=0,
            bytes_accessed=2 * b * c * hwt * itemsize + b * c * 4,
        ),
    )(x2, attn)


# ------------------------------------ sizing policy ------------------------------------
def _vmem_phys_bytes():
    try:
        return int(pltpu.get_tpu_info().vmem_capacity_bytes)
    except Exception:
        return 64 << 20            # v7x physical; conservative for v5e/v6e (128 MiB)


def _vmem_limit(block_bytes, phys):
    # Pallas double-buffers each blocked operand; leave headroom for scratch/compiler.
    need = 4 * block_bytes + (8 << 20)
    return int(min(max(need, 32 << 20), int(phys * 0.75)))


def _pick_bt(b, slab_bytes, budget):
    """Pack several batch elements per block when slabs are tiny, but keep >= 2 grid
    steps (also keeps the parallel axis >= 2 so both v7x TensorCores get work)."""
    if slab_bytes < (1 << 20):
        for cand in (8, 4, 2):
            if b % cand == 0 and b // cand >= 2 and 4 * cand * slab_bytes <= budget:
                return cand
    return 1


def _pick_spatial_tile(hwt, c, itemsize, budget):
    """Largest lane-dense (multiple-of-128) divisor of HWT that fits the budget while
    leaving >= 4 pipeline steps per batch to hide DMA."""
    cands = [d for d in range(128, hwt + 1, 128) if hwt % d == 0]
    if not cands:
        return hwt                 # cannot tile lane-densely; use the full extent
    fits = [d for d in cands if 6 * c * d * itemsize <= budget]
    if not fits:
        return cands[0]
    deep = [d for d in fits if hwt // d >= 4]
    return max(deep) if deep else max(fits)


# ------------------------------------------ glue ------------------------------------------
def eca_forward(x, conv_w, *, force_tiled=False, spatial_tile=None):
    """x: (b, c, h, w, t);  conv_w: (1, 1, k, k) Conv2d(1, 1, k, pad=(k-1)//2, bias=False)."""
    b, c, h, w, t = x.shape
    k = conv_w.shape[-1]
    assert k % 2 == 1, "ECA uses odd kernel sizes (PyTorch padding only round-trips for odd k)"
    pad = (k - 1) // 2
    hwt = h * w * t
    itemsize = jnp.dtype(x.dtype).itemsize

    x2 = x.reshape(b, c, hwt)                          # contiguous view, no data movement
    w_mid = conv_w[0, 0, pad, :].astype(jnp.float32)   # only conv row that sees real data

    phys = _vmem_phys_bytes()
    budget = phys // 2                                 # headroom for double-buffering etc.
    slab = c * hwt * itemsize                          # per-batch slab in bytes

    if force_tiled or (4 * slab + (2 << 20) > budget):
        # Large activations (or v7x VMEM budget): spatially tiled two-kernel path.
        ts = spatial_tile if spatial_tile is not None else _pick_spatial_tile(
            hwt, c, itemsize, budget)
        assert hwt % ts == 0
        attn = _pool_attn_call(x2, w_mid, ts=ts, k=k, pad=pad, phys=phys)
        out2 = _scale_call(x2, attn, ts=ts, phys=phys)
    else:
        # Fused single pass: 1 HBM read + 1 HBM write.
        bt = _pick_bt(b, slab, budget)
        out2 = _fused_call(x2, w_mid, bt=bt, k=k, pad=pad, phys=phys)

    return out2.reshape(b, c, h, w, t)                 # contiguous view back to PyTorch layout


# ----------------------------------- pure-JAX reference -----------------------------------
def eca_reference(x, conv_w):
    y = jnp.mean(x, axis=(2, 3, 4))                                   # (b, c)
    y4 = y[:, None, None, :]                                          # (b, 1, 1, c) NCHW
    conv = lax.conv_general_dilated(y4, conv_w, (1, 1), "SAME",
                                    dimension_numbers=("NCHW", "OIHW", "NCHW"))
    attn = jax.nn.sigmoid(conv[:, 0, 0, :])                           # (b, c)
    return x * attn[:, :, None, None, None]


if __name__ == "__main__":
    B, C, H, W, T = 2, 4, 16, 16, 8
    K = 3
    key = jax.random.PRNGKey(0)
    kx, kw = jax.random.split(key)
    x = jax.random.normal(kx, (B, C, H, W, T), jnp.float32)
    conv_w = 0.5 * jax.random.normal(kw, (1, 1, K, K), jnp.float32)

    ref = jax.block_until_ready(eca_reference(x, conv_w))

    # 1) Fused single-pass path (what small/medium slabs take automatically).
    out = jax.block_until_ready(eca_forward(x, conv_w))
    assert out.shape == (B, C, H, W, T), out.shape
    assert jnp.allclose(out, ref, atol=1e-4, rtol=1e-4), float(jnp.max(jnp.abs(out - ref)))

    # 2) Tiled two-kernel path (large-activation / v7x VMEM path), forced at small size.
    out_t = jax.block_until_ready(eca_forward(x, conv_w, force_tiled=True, spatial_tile=512))
    assert jnp.allclose(out_t, ref, atol=1e-4, rtol=1e-4), float(jnp.max(jnp.abs(out_t - ref)))

    # 3) bf16 traffic-halving path: bf16 in HBM, f32 accumulate in-kernel, bf16 store.
    x_bf16 = x.astype(jnp.bfloat16)
    out_b = jax.block_until_ready(eca_forward(x_bf16, conv_w))
    ref_b = eca_reference(x_bf16.astype(jnp.float32), conv_w)
    assert out_b.dtype == jnp.bfloat16
    assert jnp.allclose(out_b.astype(jnp.float32), ref_b, atol=3e-2, rtol=3e-2)

    print("KERNEL_OK")
</pallas_src>

<mosaic_0001>
module attributes {stable_mosaic.version = 11 : i64} {
  func.func @_eca_fused_kernel(%arg0: i32, %arg1: memref<1x4x2048xf32, #tpu.memory_space<vmem>>, %arg2: memref<3xf32, #tpu.memory_space<smem>>, %arg3: memref<1x4x2048xf32, #tpu.memory_space<vmem>>, %arg4: memref<6x1xf32, #tpu.memory_space<vmem>>) attributes {dimension_semantics = [#tpu.dimension_semantics<parallel>], iteration_bounds = array<i64: 2>, scalar_prefetch = 0 : i64, scratch_operands = 1 : i64, tpu.core_type = #tpu.core_type<tc>, window_params = [{transform_indices = @transform_0, window_bounds = array<i64: 1, 4, 2048>}, {transform_indices = @transform_1, window_bounds = array<i64: 3>}, {transform_indices = @transform_2, window_bounds = array<i64: 1, 4, 2048>}]} {
    %c0 = arith.constant 0 : index
    %c0_0 = arith.constant 0 : index
    %c0_1 = arith.constant 0 : index
    %0 = vector.load %arg1[%c0, %c0_0, %c0_1] : memref<1x4x2048xf32, #tpu.memory_space<vmem>>, vector<1x4x2048xf32>
    %1 = vector.shape_cast %0 : vector<1x4x2048xf32> to vector<4x2048xf32>
    %cst = arith.constant dense<0.000000e+00> : vector<4xf32>
    %2 = vector.multi_reduction <add>, %1, %cst [1] : vector<4x2048xf32> to vector<4xf32>
    %3 = vector.shape_cast %2 : vector<4xf32> to vector<4x1xf32>
    %cst_2 = arith.constant 4.8828125E-4 : f32
    %4 = vector.broadcast %cst_2 : f32 to vector<4x1xf32>
    %5 = arith.mulf %3, %4 : vector<4x1xf32>
    %cst_3 = arith.constant 0.000000e+00 : f32
    %6 = vector.broadcast %cst_3 : f32 to vector<6x1xf32>
    %c0_4 = arith.constant 0 : index
    %c0_5 = arith.constant 0 : index
    %7 = vector.load %arg4[%c0_4, %c0_5] : memref<6x1xf32, #tpu.memory_space<vmem>>, vector<6x1xf32>
    tpu.vector_store %arg4[%c0_4, %c0_5], %6 {strides = array<i32>} : memref<6x1xf32, #tpu.memory_space<vmem>>, vector<6x1xf32>,
    %c1 = arith.constant 1 : index
    %c0_6 = arith.constant 0 : index
    %8 = vector.load %arg4[%c1, %c0_6] : memref<6x1xf32, #tpu.memory_space<vmem>>, vector<4x1xf32>
    tpu.vector_store %arg4[%c1, %c0_6], %5 {strides = array<i32>} : memref<6x1xf32, #tpu.memory_space<vmem>>, vector<4x1xf32>,
    %c0_7 = arith.constant 0 : index
    %9 = memref.load %arg2[%c0_7] : memref<3xf32, #tpu.memory_space<smem>>
    %c0_8 = arith.constant 0 : index
    %c0_9 = arith.constant 0 : index
    %10 = vector.load %arg4[%c0_8, %c0_9] : memref<6x1xf32, #tpu.memory_space<vmem>>, vector<4x1xf32>
    %11 = vector.broadcast %9 : f32 to vector<4x1xf32>
    %12 = arith.mulf %11, %10 : vector<4x1xf32>
    %c1_10 = arith.constant 1 : index
    %13 = memref.load %arg2[%c1_10] : memref<3xf32, #tpu.memory_space<smem>>
    %c1_11 = arith.constant 1 : index
    %c0_12 = arith.constant 0 : index
    %14 = vector.load %arg4[%c1_11, %c0_12] : memref<6x1xf32, #tpu.memory_space<vmem>>, vector<4x1xf32>
    %15 = vector.broadcast %13 : f32 to vector<4x1xf32>
    %16 = arith.mulf %15, %14 : vector<4x1xf32>
    %17 = arith.addf %12, %16 : vector<4x1xf32>
    %c2 = arith.constant 2 : index
    %18 = memref.load %arg2[%c2] : memref<3xf32, #tpu.memory_space<smem>>
    %c2_13 = arith.constant 2 : index
    %c0_14 = arith.constant 0 : index
    %19 = vector.load %arg4[%c2_13, %c0_14] : memref<6x1xf32, #tpu.memory_space<vmem>>, vector<4x1xf32>
    %20 = vector.broadcast %18 : f32 to vector<4x1xf32>
    %21 = arith.mulf %20, %19 : vector<4x1xf32>
    %22 = arith.addf %17, %21 : vector<4x1xf32>
    %cst_15 = arith.constant 0.000000e+00 : f32
    %23 = vector.broadcast %cst_15 : f32 to vector<4x1xf32>
    %24 = arith.subf %23, %22 : vector<4x1xf32>
    %25 = math.exp %24 : vector<4x1xf32>
    %cst_16 = arith.constant 1.000000e+00 : f32
    %26 = vector.broadcast %cst_16 : f32 to vector<4x1xf32>
    %27 = arith.addf %26, %25 : vector<4x1xf32>
    %cst_17 = arith.constant 1.000000e+00 : f32
    %28 = vector.broadcast %cst_17 : f32 to vector<4x1xf32>
    %29 = arith.divf %28, %27 : vector<4x1xf32>
    %30 = vector.broadcast %29 : vector<4x1xf32> to vector<4x2048xf32>
    %31 = arith.mulf %1, %30 : vector<4x2048xf32>
    %c0_18 = arith.constant 0 : index
    %c0_19 = arith.constant 0 : index
    %c0_20 = arith.constant 0 : index
    %32 = vector.load %arg3[%c0_18, %c0_19, %c0_20] : memref<1x4x2048xf32, #tpu.memory_space<vmem>>, vector<1x4x2048xf32>
    %33 = vector.shape_cast %32 : vector<1x4x2048xf32> to vector<4x2048xf32>
    %34 = vector.shape_cast %31 : vector<4x2048xf32> to vector<1x4x2048xf32>
    tpu.vector_store %arg3[%c0_18, %c0_19, %c0_20], %34 {strides = array<i32>} : memref<1x4x2048xf32, #tpu.memory_space<vmem>>, vector<1x4x2048xf32>,
    return
  }
  func.func @transform_0(%arg0: i32) -> (i32, i32, i32) {
    %c0_i32 = arith.constant 0 : i32
    %c0_i32_0 = arith.constant 0 : i32
    %c0_i32_1 = arith.constant 0 : i32
    return %arg0, %c0_i32, %c0_i32_0 : i32, i32, i32
  }
  func.func @transform_1(%arg0: i32) -> i32 {
    %c0_i32 = arith.constant 0 : i32
    %c0_i32_0 = arith.constant 0 : i32
    return %c0_i32 : i32
  }
  func.func @transform_2(%arg0: i32) -> (i32, i32, i32) {
    %c0_i32 = arith.constant 0 : i32
    %c0_i32_0 = arith.constant 0 : i32
    %c0_i32_1 = arith.constant 0 : i32
    return %arg0, %c0_i32, %c0_i32_0 : i32, i32, i32
  }
}

</mosaic_0001>

<llo_original>
// kernel: tpu_custom_call.1
$region0: #{tpu_custom_call.1}
  #allocation0 [shape = 'u32[]', space=smem, size = 0x4, offset = 0x4, fixed_abs, tag = 'smem constant byte address 0x4 - core index']
  #allocation1 [shape = 'u32[144,128]{1,0:T(1,128)}', space=vmem, size = 0x12000, scoped, tag = 'internal scratch']
  #allocation2 [shape = 'f32[6,1]{1,0:T(8,128)}', space=vmem, size = 0x1000, scoped, tag = 'scratch operand']
  %s0 = inlined_call_operand.hbm [shape: f32[2,4,2048], index: 0, kind: input, shape index: {}]
  %s1 = inlined_call_operand.vmem [shape: f32[3], index: 1, kind: input, shape index: {}]
  %s2 = inlined_call_operand.hbm [shape: f32[2,4,2048], index: 2, kind: output, shape index: {}]
  %s3 = sld [smem:[#allocation0]]
  $region49: #{tpu_custom_call.1} parent=0
    _
  %s5 = ssub.s32 1, %s3
  %s6 = scalar_select 0, %s5, %s3
  $region1: #{tpu_custom_call.1} parent=0
    #allocation3 [shape = 'u8[65536]{0}', space=vmem, size = 0x10000, scoped, tag = 'input window, operand 0']
    #allocation4 [shape = 's32[2]{0}', space=sflag, size = 0x8, scoped, tag = 'scoped memory for tpu_custom_call.1']
    #allocation5 [shape = 's32[2]{0}', space=sflag, size = 0x8, scoped, tag = 'scoped memory for tpu_custom_call.1']
    #allocation6 [shape = 's32[2]{0}', space=sflag, size = 0x8, scoped, tag = 'scoped memory for tpu_custom_call.1']
    #allocation7 [shape = 'u8[512]{0}', space=smem, size = 0x200, scoped, tag = 'input window, operand 1, single buffered']
    #allocation8 [shape = 'u8[65536]{0}', space=vmem, size = 0x10000, scoped, tag = 'output window, operand 0']
    %7 = vsyncpa [#allocation4], 0
    %s8 = scalar_lea.sflag [#allocation4], 1
    %9 = vsyncpa %s8, 0
    %10 = vsyncpa [#allocation6], 0
    %11 = vsyncpa [#allocation5], 0
    %s12 = scalar_lea.sflag [#allocation5], 1
    %13 = vsyncpa %s12, 0
    loop: start=0, step=1, limit=4
    $region2: #{tpu_custom_call.1} parent=1 // loop_pre_header
      _
    $region3: #{tpu_custom_call.1} parent=1 // loop_header
      %s15 = sphi 0, %s19
      %p16 = scmp.ge.s32.totalorder %s15, 4
      %s25 = sphi 0, %s27
      %s28 = sphi 0, %s25
      %s29 = sphi 0, %s28
      %s45 = sphi 0, %s29
      %s49 = sphi 0, %s49
      %s51 = sphi 0, %s49
      %s52 = sphi 0, %s51
      %s66 = sphi 0, %s52
      %s72 = sphi 0, %s74
      %s75 = sphi 0, %s72
      %s76 = sphi 0, %s75
      %s92 = sphi 0, %s76
    $region4: #{tpu_custom_call.1} parent=1 // loop_header_branch
      %18 = sbr.rel (%p16) target = $region8
    $region5: #{tpu_custom_call.1} parent=1 // loop_body
      %s20 = ssub.s32 %s15, 1
      %s21 = ssub.s32 %s15, 2
      %s22 = sadd.s32 %s15, 1
      %s23 = ssub.s32 %s15, %s22
      %p24 = scmp.eq.s32.totalorder %s23, 0
      %s26 = sadd.s32 %s25, 1
      %s27 = scalar_select %p24, %s25, %s26
      %p30 = pneg %p24
      %p31 = scmp.eq.s32.totalorder %s15, 1
      %p32 = por %p30, %p31
      %p33 = scmp.ne.s32.totalorder %s25, %s28
      %p34 = scmp.eq.s32.totalorder %s15, 0
      %p35 = por %p33, %p34
      %p36 = scmp.ne.s32.totalorder %s25, %s28
      %p37 = scmp.eq.s32.totalorder %s20, 1
      %p38 = por %p36, %p37
      %p39 = scmp.ne.s32.totalorder %s28, %s29
      %p40 = scmp.eq.s32.totalorder %s20, 0
      %p41 = por %p39, %p40
      %p42 = scmp.ne.s32.totalorder %s28, %s29
      %p43 = scmp.eq.s32.totalorder %s21, 1
      %p44 = por %p42, %p43
      %p46 = scmp.ne.s32.totalorder %s29, %s45
      %p47 = scmp.eq.s32.totalorder %s21, 0
      %p48 = por %p46, %p47
      %s50 = sadd.s32 %s49, 1
      %p53 = scmp.eq.s32.totalorder %s15, 1
      %p54 = scmp.ne.s32.totalorder %s49, %s51
      %p55 = scmp.eq.s32.totalorder %s15, 0
      %p56 = por %p54, %p55
      %p57 = scmp.ne.s32.totalorder %s49, %s51
      %p58 = scmp.eq.s32.totalorder %s20, 1
      %p59 = por %p57, %p58
      %p60 = scmp.ne.s32.totalorder %s51, %s52
      %p61 = scmp.eq.s32.totalorder %s20, 0
      %p62 = por %p60, %p61
      %p63 = scmp.ne.s32.totalorder %s51, %s52
      %p64 = scmp.eq.s32.totalorder %s21, 1
      %p65 = por %p63, %p64
      %p67 = scmp.ne.s32.totalorder %s52, %s66
      %p68 = scmp.eq.s32.totalorder %s21, 0
      %p69 = por %p67, %p68
      %s70 = ssub.s32 %s15, %s22
      %p71 = scmp.eq.s32.totalorder %s70, 0
      %s73 = sadd.s32 %s72, 1
      %s74 = scalar_select %p71, %s72, %s73
      %p77 = pneg %p71
      %p78 = scmp.eq.s32.totalorder %s15, 1
      %p79 = por %p77, %p78
      %p80 = scmp.ne.s32.totalorder %s72, %s75
      %p81 = scmp.eq.s32.totalorder %s15, 0
      %p82 = por %p80, %p81
      %p83 = scmp.ne.s32.totalorder %s72, %s75
      %p84 = scmp.eq.s32.totalorder %s20, 1
      %p85 = por %p83, %p84
      %p86 = scmp.ne.s32.totalorder %s75, %s76
      %p87 = scmp.eq.s32.totalorder %s20, 0
      %p88 = por %p86, %p87
      %p89 = scmp.ne.s32.totalorder %s75, %s76
      %p90 = scmp.eq.s32.totalorder %s21, 1
      %p91 = por %p89, %p90
      %p93 = scmp.ne.s32.totalorder %s76, %s92
      %p94 = scmp.eq.s32.totalorder %s21, 0
      %p95 = por %p93, %p94
      %p96 = scmp.le.s32.totalorder 1, %s15
      %p97 = scmp.lt.s32.totalorder %s15, 3
      %p98 = pnand %p96, %p97
      %p99 = pneg %p98
      // Predicated region
      $region9: #{tpu_custom_call.1} parent=5 // pred_check
        _
      $region10: #{tpu_custom_call.1} parent=5 // pred_check_branch
        %101 = sbr.rel (%p98) target = $region12
      $region11: #{tpu_custom_call.1} parent=5 // pred_region
        %s102 = ssub.s32 %s15, 1
        // Predicated region
        $region13: #{tpu_custom_call.1} parent=11 // pred_check
          %p103 = pneg %p62
        $region14: #{tpu_custom_call.1} parent=11 // pred_check_branch
          %105 = sbr.rel (%p103) target = $region16
        $region15: #{tpu_custom_call.1} parent=11 // pred_region
          %s107 = ssub.s32 16, 16
          %108 = vsyncadd [#allocation6], %s107
          %s110 = sshll.u32 %s1, 4
          %s111 = int_to_ptr.vmem [resolvable:$true] %s110
          %113 = dma.vmem_to_smem %s111, 16, [#allocation7], [#allocation6]
        $region16: #{tpu_custom_call.1} parent=11 // pred_fallthru
          _
      $region12: #{tpu_custom_call.1} parent=5 // pred_fallthru
        _
      %p114 = scmp.lt.s32.totalorder %s15, 2
      // Predicated region
      $region17: #{tpu_custom_call.1} parent=5 // pred_check
        %p115 = pneg %p114
      $region18: #{tpu_custom_call.1} parent=5 // pred_check_branch
        %117 = sbr.rel (%p115) target = $region20
      $region19: #{tpu_custom_call.1} parent=5 // pred_region
        // Predicated region
        $region21: #{tpu_custom_call.1} parent=19 // pred_check
          %p118 = pneg %p35
        $region22: #{tpu_custom_call.1} parent=19 // pred_check_branch
          %120 = sbr.rel (%p118) target = $region24
        $region23: #{tpu_custom_call.1} parent=19 // pred_region
          %s121 = sand.u32 %s25, 1
          %s122 = scalar_lea.sflag [#allocation4], %s121
          %s123 = sand.u32 %s25, 1
          %s124 = smul.addr %s123, 64
          %s125 = scalar_lea.vmem [#allocation3], %s124
          %s127 = ssub.s32 1024, 1024
          %128 = vsyncadd %s122, %s127
          %s129 = smul.addr %s15, 16
          %s130 = smul.addr %s129, 64
          %s131 = scalar_lea.hbm %s0, %s130
          %s133 = sshll.u32 %s125, 4
          %s134 = int_to_ptr.vmem [resolvable:$true] %s133
          %136 = dma.hbm_to_vmem [thread:$0]  %s131, 1024, %s134, %s122
        $region24: #{tpu_custom_call.1} parent=19 // pred_fallthru
          _
      $region20: #{tpu_custom_call.1} parent=5 // pred_fallthru
        _
      %p137 = scmp.le.s32.totalorder 1, %s15
      %p138 = scmp.lt.s32.totalorder %s15, 3
      %p139 = pnand %p137, %p138
      %p140 = pneg %p139
      // Predicated region
      $region25: #{tpu_custom_call.1} parent=5 // pred_check
        _
      $region26: #{tpu_custom_call.1} parent=5 // pred_check_branch
        %142 = sbr.rel (%p139) target = $region28
      $region27: #{tpu_custom_call.1} parent=5 // pred_region
        %s143 = ssub.s32 %s15, 1
        %s144 = sand.u32 %s28, 1
        %s145 = scalar_lea.sflag [#allocation4], %s144
        %s146 = sand.u32 %s28, 1
        %s147 = smul.addr %s146, 64
        %s148 = scalar_lea.vmem [#allocation3], %s147
        // Predicated region
        $region29: #{tpu_custom_call.1} parent=27 // pred_check
          %p149 = pneg %p41
        $region30: #{tpu_custom_call.1} parent=27 // pred_check_branch
          %151 = sbr.rel (%p149) target = $region32
        $region31: #{tpu_custom_call.1} parent=27 // pred_region
          %152 = dma.done %s145, 1024
        $region32: #{tpu_custom_call.1} parent=27 // pred_fallthru
          _
        // Predicated region
        $region33: #{tpu_custom_call.1} parent=27 // pred_check
          %p153 = pneg %p62
        $region34: #{tpu_custom_call.1} parent=27 // pred_check_branch
          %155 = sbr.rel (%p153) target = $region36
        $region35: #{tpu_custom_call.1} parent=27 // pred_region
          %156 = dma.done [#allocation6], 16
        $region36: #{tpu_custom_call.1} parent=27 // pred_fallthru
          _
        %157 = sfence
        %s158 = sand.u32 %s28, 1
        %s159 = scalar_lea.sflag [#allocation4], %s158
        %s160 = sand.u32 %s28, 1
        %s161 = smul.addr %s160, 64
        %s162 = scalar_lea.vmem [#allocation3], %s161
        %p163 = pneg %p41
        %p164 = pneg %p38
        %p165 = pneg %p62
        %p166 = pneg %p59
        %p167 = pneg %p88
        %p168 = pneg %p85
        %s169 = sand.u32 %s75, 1
        %s170 = scalar_lea.sflag [#allocation5], %s169
        %s171 = sand.u32 %s75, 1
        %s172 = smul.addr %s171, 64
        %s173 = scalar_lea.vmem [#allocation8], %s172
        %v174 = vld [vmem:[%s148] sm:$0xff]
        %v175 = vld [vmem:[%s148 + $0x8] sm:$0xff]
        %v176 = vld [vmem:[%s148 + $0x10] sm:$0xff]
        %v177 = vld [vmem:[%s148 + $0x18] sm:$0xff]
        %v178 = vld [vmem:[%s148 + $0x20] sm:$0xff]
        %v179 = vld [vmem:[%s148 + $0x28] sm:$0xff]
        %v180 = vld [vmem:[%s148 + $0x30] sm:$0xff]
        %v181 = vld [vmem:[%s148 + $0x38] sm:$0xff]
        %v190 = vcombine.high %v174, %v174
        %v191 = vcombine.high %v175, %v175
        %v192 = vcombine.high %v176, %v176
        %v193 = vcombine.high %v177, %v177
        %v194 = vcombine.high %v178, %v178
        %v195 = vcombine.high %v179, %v179
        %v196 = vcombine.high %v180, %v180
        %v197 = vcombine.high %v181, %v181
        %vm206 = vcmask 1043456
        %v207 = vsel %vm206, %v174, 0.0
        %v208 = vsel %vm206, %v190, 0.0
        %v209 = vadd.f32 %v207, %v208
        %v210 = vsel %vm206, %v175, 0.0
        %v211 = vadd.f32 %v209, %v210
        %v212 = vsel %vm206, %v191, 0.0
        %v213 = vadd.f32 %v211, %v212
        %v214 = vsel %vm206, %v176, 0.0
        %v215 = vadd.f32 %v213, %v214
        %v216 = vsel %vm206, %v192, 0.0
        %v217 = vadd.f32 %v215, %v216
        %v218 = vsel %vm206, %v177, 0.0
        %v219 = vadd.f32 %v217, %v218
        %v220 = vsel %vm206, %v193, 0.0
        %v221 = vadd.f32 %v219, %v220
        %v222 = vsel %vm206, %v178, 0.0
        %v223 = vadd.f32 %v221, %v222
        %v224 = vsel %vm206, %v194, 0.0
        %v225 = vadd.f32 %v223, %v224
        %v226 = vsel %vm206, %v179, 0.0
        %v227 = vadd.f32 %v225, %v226
        %v228 = vsel %vm206, %v195, 0.0
        %v229 = vadd.f32 %v227, %v228
        %v230 = vsel %vm206, %v180, 0.0
        %v231 = vadd.f32 %v229, %v230
        %v232 = vsel %vm206, %v196, 0.0
        %v233 = vadd.f32 %v231, %v232
        %v234 = vsel %vm206, %v181, 0.0
        %v235 = vadd.f32 %v233, %v234
        %v236 = vsel %vm206, %v197, 0.0
        %v237 = vadd.f32 %v235, %v236
        %238 = vadd.xlane.f32.xlu0 %v237
        %v239 = vpop.xlane.xlu0 %238
        %v240 = vmul.f32 %v239, 0.00048828125
        %vm241 = vcmask 5120
        %242 = vst.msk [vmem:[#allocation2] sm:$0x3f] %vm241, 0.0
        %vm243 = vcmask 3072
        %244 = vst.msk [vmem:[#allocation2 + $0x1] sm:$0xf] %vm243, %v240
        %s245 = sld [smem:[#allocation7]]
        %v246 = vld [vmem:[#allocation2] sm:$0xf]
        %v247 = vstv %s245
        %v248 = vmul.f32 %v247, %v246
        %s249 = sld [smem:[#allocation7 + $0x1]]
        %v250 = vld [vmem:[#allocation2 + $0x1] sm:$0xf]
        %v251 = vstv %s249
        %v252 = vmul.f32 %v251, %v250
        %v253 = vadd.f32 %v248, %v252
        %s254 = sld [smem:[#allocation7 + $0x2]]
        %v255 = vld [vmem:[#allocation2 + $0x2] sm:$0xf]
        %v256 = vstv %s254
        %v257 = vmul.f32 %v256, %v255
        %v258 = vadd.f32 %v253, %v257
        %v259 = vsub.f32 0.0, %v258
        %v260 = vmul.f32 %v259, 1.442695
        %v261 = vpow.pop %v260
        %v262 = vadd.f32 %v261, 1.0
        %v263 = vrcp.pop %v262
        %v264 = vmul.f32 1.0, %v263
        %266 = vset.pattern.permute.xlu0 0
        %267 = vperm.xlu0 %266, %v264
        %v268 = vpop.permute.xlu0 %267
        %v270 = vunpack.c.l.s4 839922192
        %v271 = vunpack.c.0.s8 %v270
        %v272 = vlaneseq
        %v273 = vshrl.u32 %v272, 7
        %v274 = vsub.s32 %v271, %v273
        %v275 = vrot.slane %v268, %v274
        %v277 = vmul.f32 %v174, %v275
        %v278 = vmul.f32 %v175, %v275
        %v279 = vmul.f32 %v176, %v275
        %v280 = vmul.f32 %v177, %v275
        %v281 = vmul.f32 %v178, %v275
        %v282 = vmul.f32 %v179, %v275
        %v283 = vmul.f32 %v180, %v275
        %v284 = vmul.f32 %v181, %v275
        %285 = vst [vmem:[%s173] sm:$0xff] %v277
        %286 = vst [vmem:[%s173 + $0x8] sm:$0xff] %v278
        %287 = vst [vmem:[%s173 + $0x10] sm:$0xff] %v279
        %288 = vst [vmem:[%s173 + $0x18] sm:$0xff] %v280
        %289 = vst [vmem:[%s173 + $0x20] sm:$0xff] %v281
        %290 = vst [vmem:[%s173 + $0x28] sm:$0xff] %v282
        %291 = vst [vmem:[%s173 + $0x30] sm:$0xff] %v283
        %292 = vst [vmem:[%s173 + $0x38] sm:$0xff] %v284
        %s293 = sand.u32 %s75, 1
        %s294 = scalar_lea.sflag [#allocation5], %s293
        %s295 = sand.u32 %s75, 1
        %s296 = smul.addr %s295, 64
        %s297 = scalar_lea.vmem [#allocation8], %s296
        // Predicated region
        $region37: #{tpu_custom_call.1} parent=27 // pred_check
          %p298 = pneg %p85
        $region38: #{tpu_custom_call.1} parent=27 // pred_check_branch
          %300 = sbr.rel (%p298) target = $region40
        $region39: #{tpu_custom_call.1} parent=27 // pred_region
          %s302 = ssub.s32 1024, 1024
          %303 = vsyncadd %s294, %s302
          %s304 = smul.addr %s20, 16
          %s305 = smul.addr %s304, 64
          %s306 = scalar_lea.hbm %s2, %s305
          %s308 = sshll.u32 %s297, 4
          %s309 = int_to_ptr.vmem [resolvable:$true] %s308
          %311 = dma.vmem_to_hbm [thread:$0]  %s309, 1024, %s306, %s294
        $region40: #{tpu_custom_call.1} parent=27 // pred_fallthru
          _
      $region28: #{tpu_custom_call.1} parent=5 // pred_fallthru
        _
      %p312 = scmp.le.s32.totalorder 2, %s15
      // Predicated region
      $region41: #{tpu_custom_call.1} parent=5 // pred_check
        %p313 = pneg %p312
      $region42: #{tpu_custom_call.1} parent=5 // pred_check_branch
        %315 = sbr.rel (%p313) target = $region44
      $region43: #{tpu_custom_call.1} parent=5 // pred_region
        %s316 = ssub.s32 %s15, 2
        // Predicated region
        $region45: #{tpu_custom_call.1} parent=43 // pred_check
          %p317 = pneg %p91
        $region46: #{tpu_custom_call.1} parent=43 // pred_check_branch
          %319 = sbr.rel (%p317) target = $region48
        $region47: #{tpu_custom_call.1} parent=43 // pred_region
          %s320 = sand.u32 %s76, 1
          %s321 = scalar_lea.sflag [#allocation5], %s320
          %s322 = sand.u32 %s76, 1
          %s323 = smul.addr %s322, 64
          %s324 = scalar_lea.vmem [#allocation8], %s323
          %325 = dma.done %s321, 1024
        $region48: #{tpu_custom_call.1} parent=43 // pred_fallthru
          _
      $region44: #{tpu_custom_call.1} parent=5 // pred_fallthru
        _
    $region6: #{tpu_custom_call.1} parent=1 // loop_footer
      %s19 = sadd.s32 1, %s15
    $region7: #{tpu_custom_call.1} parent=1 // loop_footer_branch
      %14 = sbr.rel target = $region3
    $region8: #{tpu_custom_call.1} parent=1 // loop_exit
      _
    %326 = vsyncpa [#allocation4], 1
    %s327 = scalar_lea.sflag [#allocation4], 1
    %328 = vsyncpa %s327, 1
    %329 = vsyncpa [#allocation5], 1
    %s330 = scalar_lea.sflag [#allocation5], 1
    %331 = vsyncpa %s330, 1
    %332 = vsyncpa [#allocation6], 1
    %s333 = scalar_lea.sflag [#allocation6], 1
    %334 = vsyncpa %s333, 1

</llo_original>
